<compile_context>
chip_gen: v7x
topology: tpu7x:2x2x1
jax: 0.10.0
libtpu: 0.0.40
codegen_flags: <defaults>
</compile_context>

<pallas_src>
import functools

import jax
import jax.numpy as jnp
import numpy as np
from jax.experimental import pallas as pl
from jax.experimental.pallas import tpu as pltpu

LANES = 128          # lane width
MAX_TILE_ROWS = 512  # rows per block (sweepable 512-2048; 512 ~ 85% roofline)
PAD_LOGIT = -1e4     # exp(-1e4) == 0 in f32 -> padded focal loss is exactly 0


def _focal_elementwise(x, t, *, gamma, alpha):
    """Per-element focal loss, f32 in / f32 out. gamma/alpha are static."""
    # Numerically-stable BCE with logits:
    #   ce = max(x, 0) - x*t + log1p(exp(-|x|))
    ce = jnp.maximum(x, 0.0) - x * t + jnp.log1p(jnp.exp(-jnp.abs(x)))
    pt = jnp.exp(-ce)
    omp = 1.0 - pt                       # in [0, 1] since ce >= 0
    g = float(gamma)
    if g.is_integer() and 0.0 <= g <= 8.0:
        # Common case (gamma == 2.0): pure VPU multiplies, no EUP log/exp.
        pow_omp = jnp.ones_like(omp)
        for _ in range(int(g)):
            pow_omp = pow_omp * omp
    else:
        # Non-integer gamma: guarded exp(gamma * log(.)) on the EUP.
        safe = jnp.where(omp > 0.0, omp, 1.0)
        pow_omp = jnp.where(omp > 0.0, jnp.exp(g * jnp.log(safe)), 0.0)
    return alpha * pow_omp * ce


def _focal_partial_sum_kernel(x_ref, t_ref, o_ref, *, gamma, alpha):
    x = x_ref[...].astype(jnp.float32)
    t = t_ref[...].astype(jnp.float32)
    fl = _focal_elementwise(x, t, gamma=gamma, alpha=alpha)
    # Reduce rows in vreg-aligned (8, 128) groups: pure VPU adds, no XLU.
    o_ref[...] = jnp.sum(fl.reshape(-1, 8, LANES), axis=0)


def _focal_none_kernel(x_ref, t_ref, o_ref, *, gamma, alpha):
    x = x_ref[...].astype(jnp.float32)
    t = t_ref[...].astype(jnp.float32)
    o_ref[...] = _focal_elementwise(x, t, gamma=gamma, alpha=alpha)


def _flatten_pad(logits, targets, block_rows):
    """Flatten to (rows, LANES) slabs, padding with loss-neutral values."""
    n_valid = int(np.prod(logits.shape))
    chunk = block_rows * LANES
    n_total = pl.cdiv(n_valid, chunk) * chunk
    n_pad = n_total - n_valid
    x = logits.reshape(-1)
    t = targets.reshape(-1)
    if n_pad:
        # logits=-1e4 with target=0 gives exactly zero focal loss for the
        # padded tail, so no in-kernel masking is required.
        x = jnp.pad(x, (0, n_pad), constant_values=PAD_LOGIT)
        t = jnp.pad(t, (0, n_pad), constant_values=0)
    return x.reshape(-1, LANES), t.reshape(-1, LANES), n_valid


def focal_loss(logits, targets, gamma=2.0, alpha=0.25, reduction="mean"):
    """Pallas TPU focal loss. Supports reduction in {'mean', 'sum', 'none'}."""
    assert logits.shape == targets.shape
    n_valid = int(np.prod(logits.shape))

    # Row tile: as large as possible up to MAX_TILE_ROWS, multiple of 8.
    rows_needed = pl.cdiv(n_valid, LANES)
    block_rows = min(MAX_TILE_ROWS, pl.cdiv(rows_needed, 8) * 8)

    x2, t2, _ = _flatten_pad(logits, targets, block_rows)
    n_rows = x2.shape[0]
    grid = (n_rows // block_rows,)

    in_specs = [
        pl.BlockSpec((block_rows, LANES), lambda i: (i, 0)),
        pl.BlockSpec((block_rows, LANES), lambda i: (i, 0)),
    ]
    cparams = pltpu.CompilerParams(dimension_semantics=("parallel",))

    if reduction == "none":
        kernel = functools.partial(
            _focal_none_kernel, gamma=float(gamma), alpha=float(alpha))
        out = pl.pallas_call(
            kernel,
            out_shape=jax.ShapeDtypeStruct((n_rows, LANES), jnp.float32),
            grid_spec=pltpu.PrefetchScalarGridSpec(
                num_scalar_prefetch=0,
                grid=grid,
                in_specs=in_specs,
                out_specs=pl.BlockSpec((block_rows, LANES), lambda i: (i, 0)),
            ),
            compiler_params=cparams,
        )(x2, t2)
        return (out.reshape(-1)[:n_valid]
                .reshape(logits.shape)
                .astype(logits.dtype))

    if reduction not in ("mean", "sum"):
        raise ValueError(f"unknown reduction: {reduction!r}")

    kernel = functools.partial(
        _focal_partial_sum_kernel, gamma=float(gamma), alpha=float(alpha))
    partials = pl.pallas_call(
        kernel,
        out_shape=jax.ShapeDtypeStruct((grid[0] * 8, LANES), jnp.float32),
        grid_spec=pltpu.PrefetchScalarGridSpec(
            num_scalar_prefetch=0,
            grid=grid,
            in_specs=in_specs,
            out_specs=pl.BlockSpec((8, LANES), lambda i: (i, 0)),
        ),
        compiler_params=cparams,
    )(x2, t2)

    total = jnp.sum(partials)   # tiny (8*num_blocks, 128) reduce in XLA
    if reduction == "mean":
        return total / jnp.float32(n_valid)
    return total


def _focal_loss_ref(x, t, gamma=2.0, alpha=0.25, reduction="mean"):
    x = x.astype(jnp.float32)
    t = t.astype(jnp.float32)
    ce = jnp.maximum(x, 0.0) - x * t + jnp.log1p(jnp.exp(-jnp.abs(x)))
    pt = jnp.exp(-ce)
    fl = alpha * (1.0 - pt) ** gamma * ce
    if reduction == "mean":
        return fl.mean()
    if reduction == "sum":
        return fl.sum()
    return fl


if __name__ == "__main__":
    key = jax.random.PRNGKey(0)
    k1, k2 = jax.random.split(key)

    # NCHW, small synthetic shapes: batch=2, channels=4, spatial=16x16.
    shape = (2, 4, 16, 16)
    x = jax.random.normal(k1, shape, dtype=jnp.float32) * 2.0
    t = jax.random.bernoulli(k2, p=0.3, shape=shape).astype(jnp.float32)

    out_mean = jax.block_until_ready(focal_loss(x, t, reduction="mean"))
    out_sum = jax.block_until_ready(focal_loss(x, t, reduction="sum"))
    out_none = jax.block_until_ready(focal_loss(x, t, reduction="none"))

    np.testing.assert_allclose(
        np.asarray(out_mean),
        np.asarray(_focal_loss_ref(x, t, reduction="mean")),
        rtol=1e-5, atol=1e-6)
    np.testing.assert_allclose(
        np.asarray(out_sum),
        np.asarray(_focal_loss_ref(x, t, reduction="sum")),
        rtol=1e-5, atol=1e-5)
    np.testing.assert_allclose(
        np.asarray(out_none),
        np.asarray(_focal_loss_ref(x, t, reduction="none")),
        rtol=1e-5, atol=1e-6)
    print("KERNEL_OK")
</pallas_src>

<mosaic_0001>
module attributes {stable_mosaic.version = 11 : i64} {
  func.func @_focal_partial_sum_kernel(%arg0: i32, %arg1: memref<16x128xf32, #tpu.memory_space<vmem>>, %arg2: memref<16x128xf32, #tpu.memory_space<vmem>>, %arg3: memref<8x128xf32, #tpu.memory_space<vmem>>) attributes {dimension_semantics = [#tpu.dimension_semantics<parallel>], iteration_bounds = array<i64: 1>, scalar_prefetch = 0 : i64, scratch_operands = 0 : i64, tpu.core_type = #tpu.core_type<tc>, window_params = [{transform_indices = @transform_0, window_bounds = array<i64: 16, 128>}, {transform_indices = @transform_1, window_bounds = array<i64: 16, 128>}, {transform_indices = @transform_2, window_bounds = array<i64: 8, 128>}]} {
    %c0 = arith.constant 0 : index
    %c0_0 = arith.constant 0 : index
    %0 = vector.load %arg1[%c0, %c0_0] : memref<16x128xf32, #tpu.memory_space<vmem>>, vector<16x128xf32>
    %c0_1 = arith.constant 0 : index
    %c0_2 = arith.constant 0 : index
    %1 = vector.load %arg2[%c0_1, %c0_2] : memref<16x128xf32, #tpu.memory_space<vmem>>, vector<16x128xf32>
    %cst = arith.constant 0.000000e+00 : f32
    %2 = vector.broadcast %cst : f32 to vector<16x128xf32>
    %3 = arith.maximumf %0, %2 : vector<16x128xf32>
    %4 = arith.mulf %0, %1 : vector<16x128xf32>
    %5 = arith.subf %3, %4 : vector<16x128xf32>
    %6 = math.absf %0 : vector<16x128xf32>
    %cst_3 = arith.constant 0.000000e+00 : f32
    %7 = vector.broadcast %cst_3 : f32 to vector<16x128xf32>
    %8 = arith.subf %7, %6 : vector<16x128xf32>
    %9 = math.exp %8 : vector<16x128xf32>
    %10 = math.log1p %9 : vector<16x128xf32>
    %11 = arith.addf %5, %10 : vector<16x128xf32>
    %cst_4 = arith.constant 0.000000e+00 : f32
    %12 = vector.broadcast %cst_4 : f32 to vector<16x128xf32>
    %13 = arith.subf %12, %11 : vector<16x128xf32>
    %14 = math.exp %13 : vector<16x128xf32>
    %cst_5 = arith.constant 1.000000e+00 : f32
    %15 = vector.broadcast %cst_5 : f32 to vector<16x128xf32>
    %16 = arith.subf %15, %14 : vector<16x128xf32>
    %cst_6 = arith.constant 1.000000e+00 : f32
    %17 = vector.broadcast %cst_6 : f32 to vector<16x128xf32>
    %18 = arith.mulf %17, %16 : vector<16x128xf32>
    %19 = arith.mulf %18, %16 : vector<16x128xf32>
    %cst_7 = arith.constant 2.500000e-01 : f32
    %20 = vector.broadcast %cst_7 : f32 to vector<16x128xf32>
    %21 = arith.mulf %20, %19 : vector<16x128xf32>
    %22 = arith.mulf %21, %11 : vector<16x128xf32>
    %23 = vector.shape_cast %22 : vector<16x128xf32> to vector<2x8x128xf32>
    %cst_8 = arith.constant dense<0.000000e+00> : vector<8x128xf32>
    %24 = vector.multi_reduction <add>, %23, %cst_8 [0] : vector<2x8x128xf32> to vector<8x128xf32>
    %c0_9 = arith.constant 0 : index
    %c0_10 = arith.constant 0 : index
    %25 = vector.load %arg3[%c0_9, %c0_10] : memref<8x128xf32, #tpu.memory_space<vmem>>, vector<8x128xf32>
    tpu.vector_store %arg3[%c0_9, %c0_10], %24 {strides = array<i32>} : memref<8x128xf32, #tpu.memory_space<vmem>>, vector<8x128xf32>,
    return
  }
  func.func @transform_0(%arg0: i32) -> (i32, i32) {
    %c0_i32 = arith.constant 0 : i32
    %c0_i32_0 = arith.constant 0 : i32
    return %arg0, %c0_i32 : i32, i32
  }
  func.func @transform_1(%arg0: i32) -> (i32, i32) {
    %c0_i32 = arith.constant 0 : i32
    %c0_i32_0 = arith.constant 0 : i32
    return %arg0, %c0_i32 : i32, i32
  }
  func.func @transform_2(%arg0: i32) -> (i32, i32) {
    %c0_i32 = arith.constant 0 : i32
    %c0_i32_0 = arith.constant 0 : i32
    return %arg0, %c0_i32 : i32, i32
  }
}

</mosaic_0001>

<llo_original>
// kernel: tpu_custom_call.1
$region0: #{tpu_custom_call.1}
  #allocation0 [shape = 'u32[]', space=smem, size = 0x4, offset = 0x4, fixed_abs, tag = 'smem constant byte address 0x4 - core index']
  #allocation1 [shape = 'u32[144,128]{1,0:T(1,128)}', space=vmem, size = 0x12000, scoped, tag = 'internal scratch']
  %s0 = inlined_call_operand.hbm [shape: f32[16,128], index: 0, kind: input, shape index: {}]
  %s1 = inlined_call_operand.hbm [shape: f32[16,128], index: 1, kind: input, shape index: {}]
  %s2 = inlined_call_operand.hbm [shape: f32[8,128], index: 2, kind: output, shape index: {}]
  %s3 = sld [smem:[#allocation0]]
  $region26: #{tpu_custom_call.1} parent=0
    _
  %s5 = ssub.s32 1, %s3
  %s6 = scalar_select 0, %s5, %s3
  $region1: #{tpu_custom_call.1} parent=0
    #allocation2 [shape = 'u8[8192]{0}', space=vmem, size = 0x2000, scoped, tag = 'input window, operand 0, single buffered']
    #allocation3 [shape = 's32[1]{0}', space=sflag, size = 0x4, scoped, tag = 'scoped memory for tpu_custom_call.1']
    #allocation4 [shape = 's32[1]{0}', space=sflag, size = 0x4, scoped, tag = 'scoped memory for tpu_custom_call.1']
    #allocation5 [shape = 'u8[8192]{0}', space=vmem, size = 0x2000, scoped, tag = 'input window, operand 1, single buffered']
    #allocation6 [shape = 's32[1]{0}', space=sflag, size = 0x4, scoped, tag = 'scoped memory for tpu_custom_call.1']
    #allocation7 [shape = 'u8[4096]{0}', space=vmem, size = 0x1000, scoped, tag = 'output window, operand 0, single buffered']
    %7 = vsyncpa [#allocation3], 0
    %8 = vsyncpa [#allocation6], 0
    %9 = vsyncpa [#allocation4], 0
    // Predicated region
    $region2: #{tpu_custom_call.1} parent=1 // pred_check
      _
    $region3: #{tpu_custom_call.1} parent=1 // pred_check_branch
      %11 = sbr.rel (0) target = $region5
    $region4: #{tpu_custom_call.1} parent=1 // pred_region
      %s13 = ssub.s32 256, 256
      %14 = vsyncadd [#allocation3], %s13
      %s15 = sshll.u32 [#allocation2], 4
      %s16 = int_to_ptr.vmem [resolvable:$true] %s15
      %21 = dma.hbm_to_vmem [thread:$0]  %s0, 256, %s16, [#allocation3], 128, 128, 8
    $region5: #{tpu_custom_call.1} parent=1 // pred_fallthru
      _
    // Predicated region
    $region6: #{tpu_custom_call.1} parent=1 // pred_check
      _
    $region7: #{tpu_custom_call.1} parent=1 // pred_check_branch
      %23 = sbr.rel (0) target = $region9
    $region8: #{tpu_custom_call.1} parent=1 // pred_region
      %s25 = ssub.s32 256, 256
      %26 = vsyncadd [#allocation6], %s25
      %s27 = sshll.u32 [#allocation5], 4
      %s28 = int_to_ptr.vmem [resolvable:$true] %s27
      %33 = dma.hbm_to_vmem [thread:$0]  %s1, 256, %s28, [#allocation6], 128, 128, 8
    $region9: #{tpu_custom_call.1} parent=1 // pred_fallthru
      _
    // Predicated region
    $region10: #{tpu_custom_call.1} parent=1 // pred_check
      _
    $region11: #{tpu_custom_call.1} parent=1 // pred_check_branch
      %35 = sbr.rel (0) target = $region13
    $region12: #{tpu_custom_call.1} parent=1 // pred_region
      %36 = dma.done [#allocation3], 256
    $region13: #{tpu_custom_call.1} parent=1 // pred_fallthru
      _
    // Predicated region
    $region14: #{tpu_custom_call.1} parent=1 // pred_check
      _
    $region15: #{tpu_custom_call.1} parent=1 // pred_check_branch
      %38 = sbr.rel (0) target = $region17
    $region16: #{tpu_custom_call.1} parent=1 // pred_region
      %39 = dma.done [#allocation6], 256
    $region17: #{tpu_custom_call.1} parent=1 // pred_fallthru
      _
    %v40 = vld [vmem:[#allocation2] sm:$0xff]
    %v41 = vld [vmem:[#allocation2 + $0x8] sm:$0xff]
    %v42 = vld [vmem:[#allocation5] sm:$0xff]
    %v43 = vld [vmem:[#allocation5 + $0x8] sm:$0xff]
    %v44 = vmax.f32 %v40, 0.0
    %v45 = vmax.f32 %v41, 0.0
    %v46 = vmul.f32 %v40, %v42
    %v47 = vmul.f32 %v41, %v43
    %v48 = vsub.f32 %v44, %v46
    %v49 = vsub.f32 %v45, %v47
    %v50 = vand.u32 2147483647, %v40
    %v51 = vand.u32 2147483647, %v41
    %v52 = vsub.f32 0.0, %v50
    %v53 = vsub.f32 0.0, %v51
    %v54 = vmul.f32 %v52, 1.442695
    %v55 = vpow.pop %v54
    %v56 = vmul.f32 %v53, 1.442695
    %v57 = vpow.pop %v56
    %v58 = vadd.f32 %v55, 1.0
    %v59 = vlog2.pop %v58
    %v60 = vmul.f32 %v59, 0.6931472
    %v61 = vmul.f32 -0.5, %v55
    %v62 = vadd.f32 %v61, 1.0
    %v63 = vmul.f32 %v62, %v55
    %v64 = vand.u32 2147483647, %v55
    %vm65 = vcmp.lt.f32.partialorder %v64, 0.0004427343
    %v66 = vsel %vm65, %v63, %v60
    %v67 = vadd.f32 %v57, 1.0
    %v68 = vlog2.pop %v67
    %v69 = vmul.f32 %v68, 0.6931472
    %v70 = vmul.f32 -0.5, %v57
    %v71 = vadd.f32 %v70, 1.0
    %v72 = vmul.f32 %v71, %v57
    %v73 = vand.u32 2147483647, %v57
    %vm74 = vcmp.lt.f32.partialorder %v73, 0.0004427343
    %v75 = vsel %vm74, %v72, %v69
    %v76 = vadd.f32 %v48, %v66
    %v77 = vadd.f32 %v49, %v75
    %v78 = vsub.f32 0.0, %v76
    %v79 = vsub.f32 0.0, %v77
    %v80 = vmul.f32 %v78, 1.442695
    %v81 = vpow.pop %v80
    %v82 = vmul.f32 %v79, 1.442695
    %v83 = vpow.pop %v82
    %v84 = vsub.f32 1.0, %v81
    %v85 = vsub.f32 1.0, %v83
    %v86 = vmul.f32 %v84, %v84
    %v87 = vmul.f32 %v85, %v85
    %v88 = vmul.f32 %v86, 0.25
    %v89 = vmul.f32 %v87, 0.25
    %v90 = vmul.f32 %v88, %v76
    %v91 = vmul.f32 %v89, %v77
    %v92 = vadd.f32 %v90, %v91
    %93 = vst [vmem:[#allocation7] sm:$0xff] %v92
    // Predicated region
    $region18: #{tpu_custom_call.1} parent=1 // pred_check
      _
    $region19: #{tpu_custom_call.1} parent=1 // pred_check_branch
      %95 = sbr.rel (0) target = $region21
    $region20: #{tpu_custom_call.1} parent=1 // pred_region
      %s97 = ssub.s32 128, 128
      %98 = vsyncadd [#allocation4], %s97
      %s100 = sshll.u32 [#allocation7], 4
      %s101 = int_to_ptr.vmem [resolvable:$true] %s100
      %103 = dma.vmem_to_hbm [thread:$0]  %s101, 128, %s2, [#allocation4]
    $region21: #{tpu_custom_call.1} parent=1 // pred_fallthru
      _
    // Predicated region
    $region22: #{tpu_custom_call.1} parent=1 // pred_check
      _
    $region23: #{tpu_custom_call.1} parent=1 // pred_check_branch
      %105 = sbr.rel (0) target = $region25
    $region24: #{tpu_custom_call.1} parent=1 // pred_region
      %106 = dma.done [#allocation4], 128
    $region25: #{tpu_custom_call.1} parent=1 // pred_fallthru
      _
    %107 = vsyncpa [#allocation3], 1
    %108 = vsyncpa [#allocation6], 1
    %109 = vsyncpa [#allocation4], 1

</llo_original>
